<compile_context>
chip_gen: v7x
topology: tpu7x:2x2x1
jax: 0.10.0
libtpu: 0.0.40
codegen_flags: <defaults>
</compile_context>

<pallas_src>
import numpy as np
import jax
import jax.numpy as jnp
from jax.experimental import pallas as pl
from jax.experimental.pallas import tpu as pltpu


def _qconvT_kernel(x_ref, w_ref, b_ref, o_ref):
    """One fused GEMM per (batch, M-tile):
       o[Cout, tile_M] = w[Cout, K] @ x[K, tile_M] + b[Cout, 1]."""
    acc = jnp.dot(w_ref[...], x_ref[0], preferred_element_type=jnp.float32)
    o_ref[0] = (acc + b_ref[...]).astype(o_ref.dtype)


def qconv_transpose2d(x_nchw, r, i, j, k, bias,
                      stride=1, padding=0, output_padding=0, dilation=1,
                      tile_m=512):
    """Forward of htorch QConvTranspose2d (groups == 1)."""
    # ---- compose the quaternion weight exactly as the PyTorch module does ----
    A = jnp.concatenate([r, -i, -j, -k], axis=0)
    B = jnp.concatenate([i, r, -k, j], axis=0)
    C = jnp.concatenate([j, k, r, -i], axis=0)
    D = jnp.concatenate([k, -j, i, r], axis=0)
    Wq = jnp.concatenate([A, B, C, D], axis=1)       # (4*O, 4*I, kH, kW)
    Wt = jnp.transpose(Wq, (1, 0, 2, 3))             # conv_transpose weight (Cin, Cout, kH, kW)

    N, Cin, H, W = x_nchw.shape
    Cin_w, Cout, kH, kW = Wt.shape
    assert Cin == Cin_w
    # TODO(synk): groups != 1 not supported (the original module also swaps the
    # dilation/groups positional args when calling F.conv_transpose2d).

    Ho = (H - 1) * stride - 2 * padding + dilation * (kH - 1) + output_padding + 1
    Wo = (W - 1) * stride - 2 * padding + dilation * (kW - 1) + output_padding + 1
    M = Ho * Wo
    K = kH * kW * Cin

    # ---- rewrite transpose-conv as stride-1 conv on a zero-dilated padded input ----
    # TODO(synk): for stride > 1 a sub-pixel (fractional-stride) decomposition would
    # avoid streaming/multiplying the inserted zero rows/cols (stride**2 fewer FLOPs
    # and input bytes); kept as the simple zero-dilation rewrite here.
    Hd = (H - 1) * stride + 1
    Wd = (W - 1) * stride + 1
    xd = jnp.zeros((N, Cin, Hd, Wd), x_nchw.dtype).at[:, :, ::stride, ::stride].set(x_nchw)
    pt = dilation * (kH - 1) - padding
    pl_ = dilation * (kW - 1) - padding
    assert pt >= 0 and pl_ >= 0, "padding too large for this simple rewrite"
    xp = jnp.pad(xd, ((0, 0), (0, 0),
                      (pt, pt + output_padding), (pl_, pl_ + output_padding)))
    # bf16 operands (f32 accumulation on the MXU); cast *before* im2col so the
    # amplified patches buffer costs half the HBM bytes.
    xp = xp.astype(jnp.bfloat16)

    # ---- im2col with the tap axis fused into K (K index = tap*Cin + cin) ----
    # TODO(synk): this still materializes a kH*kW-amplified copy of the input in
    # HBM; an in-kernel window gather (manual DMA of shifted slices of xp) would
    # remove that amplification.
    taps = []
    for kh in range(kH):
        for kw in range(kW):
            sl = jax.lax.slice(xp,
                               (0, 0, kh * dilation, kw * dilation),
                               (N, Cin, kh * dilation + Ho, kw * dilation + Wo))
            taps.append(sl.reshape(N, Cin, M))
    patches = jnp.concatenate(taps, axis=1)          # (N, K, M): K on sublanes, M on lanes

    # equivalent forward-conv weight: flip spatially, lay out as (Cout, K)
    w_flip = Wt[:, :, ::-1, ::-1]                    # (Cin, Cout, kH, kW)
    w2 = jnp.transpose(w_flip, (1, 2, 3, 0)).reshape(Cout, K).astype(jnp.bfloat16)
    b2 = bias.reshape(Cout, 1).astype(jnp.float32)

    # pad M up to a multiple of the lane tile -> unmasked lane-dense stores
    tm = min(tile_m, pl.cdiv(M, 128) * 128)
    Mp = pl.cdiv(M, tm) * tm
    if Mp != M:
        patches = jnp.pad(patches, ((0, 0), (0, 0), (0, Mp - M)))

    out = pl.pallas_call(
        _qconvT_kernel,
        out_shape=jax.ShapeDtypeStruct((N, Cout, Mp), x_nchw.dtype),
        grid_spec=pltpu.PrefetchScalarGridSpec(
            num_scalar_prefetch=0,
            grid=(N, Mp // tm),                       # no reduction axis: taps fused into K
            in_specs=[
                pl.BlockSpec((1, K, tm), lambda n, m: (n, 0, m)),
                pl.BlockSpec((Cout, K), lambda n, m: (0, 0)),
                pl.BlockSpec((Cout, 1), lambda n, m: (0, 0)),
            ],
            out_specs=pl.BlockSpec((1, Cout, tm), lambda n, m: (n, 0, m)),
        ),
        compiler_params=pltpu.CompilerParams(
            dimension_semantics=("parallel", "parallel"),
            vmem_limit_bytes=32 * 1024 * 1024),
    )(patches, w2, b2)

    # (N, Cout, M) is already NCHW channel order; drop M padding and reshape.
    return out[:, :, :M].reshape(N, Cout, Ho, Wo)


def _ref_conv_transpose2d_nchw(x, w, b, stride, padding, output_padding, dilation):
    """Naive NumPy reference implementing F.conv_transpose2d semantics (groups=1)."""
    x = np.asarray(x); w = np.asarray(w); b = np.asarray(b)
    N, Ci, H, W = x.shape
    _, Co, kH, kW = w.shape
    Hf = (H - 1) * stride + dilation * (kH - 1) + 1 + output_padding
    Wf = (W - 1) * stride + dilation * (kW - 1) + 1 + output_padding
    y = np.zeros((N, Co, Hf, Wf), np.float32)
    for ih in range(H):
        for kh in range(kH):
            oh = ih * stride + kh * dilation
            for iw in range(W):
                for kw in range(kW):
                    ow = iw * stride + kw * dilation
                    y[:, :, oh, ow] += x[:, :, ih, iw] @ w[:, :, kh, kw]
    Ho = (H - 1) * stride - 2 * padding + dilation * (kH - 1) + output_padding + 1
    Wo = (W - 1) * stride - 2 * padding + dilation * (kW - 1) + output_padding + 1
    y = y[:, :, padding:padding + Ho, padding:padding + Wo]
    return y + b[None, :, None, None]


if __name__ == "__main__":
    in_channels, out_channels, ksize = 4, 4, 3
    stride, padding, output_padding, dilation = 2, 1, 0, 1
    N, H, W = 2, 16, 16

    key = jax.random.PRNGKey(0)
    kx, kr, ki, kj, kk, kb = jax.random.split(key, 6)

    # TODO(synk): htorch's initialize_conv uses a chi-distributed quaternion
    # magnitude init; approximated here with a deterministic scaled normal.
    wshape = (out_channels, in_channels, ksize, ksize)
    scale = 1.0 / np.sqrt(2.0 * (in_channels + out_channels) * ksize * ksize)
    r = scale * jax.random.normal(kr, wshape, jnp.float32)
    i = scale * jax.random.normal(ki, wshape, jnp.float32)
    j = scale * jax.random.normal(kj, wshape, jnp.float32)
    k = scale * jax.random.normal(kk, wshape, jnp.float32)
    # module initializes bias to zeros; use a nonzero bias here to exercise the add path
    bias = 0.1 * jax.random.normal(kb, (4 * out_channels,), jnp.float32)

    # quaternion input: 4*in_channels channels, NCHW (PyTorch convention)
    x = jax.random.normal(kx, (N, 4 * in_channels, H, W), jnp.float32)

    y = qconv_transpose2d(x, r, i, j, k, bias,
                          stride=stride, padding=padding,
                          output_padding=output_padding, dilation=dilation)
    y = jax.block_until_ready(y)

    # correctness check vs naive reference with the same composed weight
    A = np.concatenate([r, -i, -j, -k], axis=0)
    B = np.concatenate([i, r, -k, j], axis=0)
    C = np.concatenate([j, k, r, -i], axis=0)
    D = np.concatenate([k, -j, i, r], axis=0)
    Wq = np.concatenate([A, B, C, D], axis=1)
    Wt = np.transpose(Wq, (1, 0, 2, 3))
    ref = _ref_conv_transpose2d_nchw(x, Wt, bias, stride, padding, output_padding, dilation)
    np.testing.assert_allclose(np.asarray(y), ref, rtol=2e-2, atol=2e-2)

    print("KERNEL_OK")
</pallas_src>

<mosaic_0001>
module attributes {stable_mosaic.version = 11 : i64} {
  func.func @_qconvT_kernel(%arg0: i32, %arg1: i32, %arg2: memref<1x144x512xbf16, #tpu.memory_space<vmem>>, %arg3: memref<16x144xbf16, #tpu.memory_space<vmem>>, %arg4: memref<16x1xf32, #tpu.memory_space<vmem>>, %arg5: memref<1x16x512xf32, #tpu.memory_space<vmem>>) attributes {dimension_semantics = [#tpu.dimension_semantics<parallel>, #tpu.dimension_semantics<parallel>], iteration_bounds = array<i64: 2, 2>, scalar_prefetch = 0 : i64, scratch_operands = 0 : i64, tpu.core_type = #tpu.core_type<tc>, window_params = [{transform_indices = @transform_0, window_bounds = array<i64: 1, 144, 512>}, {pipeline_mode = #tpu.pipeline_mode<synchronous>, transform_indices = @transform_1, window_bounds = array<i64: 16, 144>}, {pipeline_mode = #tpu.pipeline_mode<synchronous>, transform_indices = @transform_2, window_bounds = array<i64: 16, 1>}, {transform_indices = @transform_3, window_bounds = array<i64: 1, 16, 512>}]} {
    %c0 = arith.constant 0 : index
    %c0_0 = arith.constant 0 : index
    %0 = vector.load %arg3[%c0, %c0_0] : memref<16x144xbf16, #tpu.memory_space<vmem>>, vector<16x144xbf16>
    %c0_1 = arith.constant 0 : index
    %c0_2 = arith.constant 0 : index
    %c0_3 = arith.constant 0 : index
    %1 = vector.load %arg2[%c0_1, %c0_2, %c0_3] : memref<1x144x512xbf16, #tpu.memory_space<vmem>>, vector<1x144x512xbf16>
    %2 = vector.shape_cast %1 : vector<1x144x512xbf16> to vector<144x512xbf16>
    %cst = arith.constant dense<0.000000e+00> : vector<16x512xf32>
    %3 = tpu.matmul %0, %2, %cst {dimension_numbers = #tpu.dot_dimension_numbers<[1], [0], [0], [1], [0, 0, 1, 1], [], []>} : vector<16x144xbf16>, vector<144x512xbf16>, vector<16x512xf32> -> vector<16x512xf32>
    %c0_4 = arith.constant 0 : index
    %c0_5 = arith.constant 0 : index
    %4 = vector.load %arg4[%c0_4, %c0_5] : memref<16x1xf32, #tpu.memory_space<vmem>>, vector<16x1xf32>
    %5 = vector.broadcast %4 : vector<16x1xf32> to vector<16x512xf32>
    %6 = arith.addf %3, %5 : vector<16x512xf32>
    %c0_6 = arith.constant 0 : index
    %c0_7 = arith.constant 0 : index
    %c0_8 = arith.constant 0 : index
    %7 = vector.load %arg5[%c0_6, %c0_7, %c0_8] : memref<1x16x512xf32, #tpu.memory_space<vmem>>, vector<1x16x512xf32>
    %8 = vector.shape_cast %7 : vector<1x16x512xf32> to vector<16x512xf32>
    %9 = vector.shape_cast %6 : vector<16x512xf32> to vector<1x16x512xf32>
    tpu.vector_store %arg5[%c0_6, %c0_7, %c0_8], %9 {strides = array<i32>} : memref<1x16x512xf32, #tpu.memory_space<vmem>>, vector<1x16x512xf32>,
    return
  }
  func.func @transform_0(%arg0: i32, %arg1: i32) -> (i32, i32, i32) {
    %c0_i32 = arith.constant 0 : i32
    %c0_i32_0 = arith.constant 0 : i32
    return %arg0, %c0_i32, %arg1 : i32, i32, i32
  }
  func.func @transform_1(%arg0: i32, %arg1: i32) -> (i32, i32) {
    %c0_i32 = arith.constant 0 : i32
    %c0_i32_0 = arith.constant 0 : i32
    %c0_i32_1 = arith.constant 0 : i32
    return %c0_i32, %c0_i32_0 : i32, i32
  }
  func.func @transform_2(%arg0: i32, %arg1: i32) -> (i32, i32) {
    %c0_i32 = arith.constant 0 : i32
    %c0_i32_0 = arith.constant 0 : i32
    %c0_i32_1 = arith.constant 0 : i32
    return %c0_i32, %c0_i32_0 : i32, i32
  }
  func.func @transform_3(%arg0: i32, %arg1: i32) -> (i32, i32, i32) {
    %c0_i32 = arith.constant 0 : i32
    %c0_i32_0 = arith.constant 0 : i32
    return %arg0, %c0_i32, %arg1 : i32, i32, i32
  }
}

</mosaic_0001>

<llo_original>
// kernel: tpu_custom_call.1
$region0: #{tpu_custom_call.1}
  #allocation0 [shape = 'u32[]', space=smem, size = 0x4, offset = 0x4, fixed_abs, tag = 'smem constant byte address 0x4 - core index']
  #allocation1 [shape = 'u32[144,128]{1,0:T(1,128)}', space=vmem, size = 0x12000, scoped, tag = 'internal scratch']
  %s0 = inlined_call_operand.hbm [shape: bf16[2,144,1024], index: 0, kind: input, shape index: {}]
  %s1 = inlined_call_operand.vmem [shape: bf16[16,144], index: 1, kind: input, shape index: {}]
  %s2 = inlined_call_operand.vmem [shape: f32[16,1], index: 2, kind: input, shape index: {}]
  %s3 = inlined_call_operand.hbm [shape: f32[2,16,1024], index: 3, kind: output, shape index: {}]
  %s4 = sld [smem:[#allocation0]]
  $region49: #{tpu_custom_call.1} parent=0
    _
  %s6 = ssub.s32 1, %s4
  %s7 = scalar_select 0, %s6, %s4
  $region1: #{tpu_custom_call.1} parent=0
    #allocation2 [shape = 'u8[294912]{0}', space=vmem, size = 0x48000, scoped, tag = 'input window, operand 0']
    #allocation3 [shape = 's32[2]{0}', space=sflag, size = 0x8, scoped, tag = 'scoped memory for tpu_custom_call.1']
    #allocation4 [shape = 's32[2]{0}', space=sflag, size = 0x8, scoped, tag = 'scoped memory for tpu_custom_call.1']
    #allocation5 [shape = 'u8[65536]{0}', space=vmem, size = 0x10000, scoped, tag = 'output window, operand 0']
    %8 = vsyncpa [#allocation3], 0
    %s9 = scalar_lea.sflag [#allocation3], 1
    %10 = vsyncpa %s9, 0
    %11 = vsyncpa [#allocation4], 0
    %s12 = scalar_lea.sflag [#allocation4], 1
    %13 = vsyncpa %s12, 0
    loop: start=0, step=1, limit=6
    $region2: #{tpu_custom_call.1} parent=1 // loop_pre_header
      _
    $region3: #{tpu_custom_call.1} parent=1 // loop_header
      %s15 = sphi 0, %s19
      %p16 = scmp.ge.s32.totalorder %s15, 6
      %s22 = sphi 0, %s34
      %s23 = sphi 0, %s30
      %s24 = sphi 0, %s22
      %s25 = sphi 0, %s23
      %s26 = sphi 0, %s24
      %s27 = sphi 0, %s25
      %s39 = sphi 0, %s41
      %s42 = sphi 0, %s39
      %s43 = sphi 0, %s42
      %s59 = sphi 0, %s43
      %s63 = sphi 0, %s63
      %s65 = sphi 0, %s63
      %s66 = sphi 0, %s65
      %s80 = sphi 0, %s66
      %s84 = sphi 0, %s84
      %s86 = sphi 0, %s84
      %s87 = sphi 0, %s86
      %s101 = sphi 0, %s87
      %s109 = sphi 0, %s111
      %s112 = sphi 0, %s109
      %s113 = sphi 0, %s112
      %s129 = sphi 0, %s113
    $region4: #{tpu_custom_call.1} parent=1 // loop_header_branch
      %18 = sbr.rel (%p16) target = $region8
    $region5: #{tpu_custom_call.1} parent=1 // loop_body
      %s20 = ssub.s32 %s15, 1
      %s21 = ssub.s32 %s15, 2
      %s28 = sadd.s32 1, %s23
      %p29 = scmp.ge.s32.totalorder %s28, 2
      %s30 = scalar_select %p29, 0, %s28
      %s31 = sadd.s32 1, %s22
      %s32 = scalar_select %p29, %s31, %s22
      %p33 = scmp.ge.s32.totalorder %s32, 2
      %s34 = scalar_select %p33, 0, %s32
      %s35 = ssub.s32 %s22, %s34
      %s36 = ssub.s32 %s23, %s30
      %s37 = sor.u32 %s35, %s36
      %p38 = scmp.eq.s32.totalorder %s37, 0
      %s40 = sadd.s32 %s39, 1
      %s41 = scalar_select %p38, %s39, %s40
      %p44 = pneg %p38
      %p45 = scmp.eq.s32.totalorder %s15, 3
      %p46 = por %p44, %p45
      %p47 = scmp.ne.s32.totalorder %s39, %s42
      %p48 = scmp.eq.s32.totalorder %s15, 0
      %p49 = por %p47, %p48
      %p50 = scmp.ne.s32.totalorder %s39, %s42
      %p51 = scmp.eq.s32.totalorder %s20, 3
      %p52 = por %p50, %p51
      %p53 = scmp.ne.s32.totalorder %s42, %s43
      %p54 = scmp.eq.s32.totalorder %s20, 0
      %p55 = por %p53, %p54
      %p56 = scmp.ne.s32.totalorder %s42, %s43
      %p57 = scmp.eq.s32.totalorder %s21, 3
      %p58 = por %p56, %p57
      %p60 = scmp.ne.s32.totalorder %s43, %s59
      %p61 = scmp.eq.s32.totalorder %s21, 0
      %p62 = por %p60, %p61
      %s64 = sadd.s32 %s63, 1
      %p67 = scmp.eq.s32.totalorder %s15, 3
      %p68 = scmp.ne.s32.totalorder %s63, %s65
      %p69 = scmp.eq.s32.totalorder %s15, 0
      %p70 = por %p68, %p69
      %p71 = scmp.ne.s32.totalorder %s63, %s65
      %p72 = scmp.eq.s32.totalorder %s20, 3
      %p73 = por %p71, %p72
      %p74 = scmp.ne.s32.totalorder %s65, %s66
      %p75 = scmp.eq.s32.totalorder %s20, 0
      %p76 = por %p74, %p75
      %p77 = scmp.ne.s32.totalorder %s65, %s66
      %p78 = scmp.eq.s32.totalorder %s21, 3
      %p79 = por %p77, %p78
      %p81 = scmp.ne.s32.totalorder %s66, %s80
      %p82 = scmp.eq.s32.totalorder %s21, 0
      %p83 = por %p81, %p82
      %s85 = sadd.s32 %s84, 1
      %p88 = scmp.eq.s32.totalorder %s15, 3
      %p89 = scmp.ne.s32.totalorder %s84, %s86
      %p90 = scmp.eq.s32.totalorder %s15, 0
      %p91 = por %p89, %p90
      %p92 = scmp.ne.s32.totalorder %s84, %s86
      %p93 = scmp.eq.s32.totalorder %s20, 3
      %p94 = por %p92, %p93
      %p95 = scmp.ne.s32.totalorder %s86, %s87
      %p96 = scmp.eq.s32.totalorder %s20, 0
      %p97 = por %p95, %p96
      %p98 = scmp.ne.s32.totalorder %s86, %s87
      %p99 = scmp.eq.s32.totalorder %s21, 3
      %p100 = por %p98, %p99
      %p102 = scmp.ne.s32.totalorder %s87, %s101
      %p103 = scmp.eq.s32.totalorder %s21, 0
      %p104 = por %p102, %p103
      %s105 = ssub.s32 %s22, %s34
      %s106 = ssub.s32 %s23, %s30
      %s107 = sor.u32 %s105, %s106
      %p108 = scmp.eq.s32.totalorder %s107, 0
      %s110 = sadd.s32 %s109, 1
      %s111 = scalar_select %p108, %s109, %s110
      %p114 = pneg %p108
      %p115 = scmp.eq.s32.totalorder %s15, 3
      %p116 = por %p114, %p115
      %p117 = scmp.ne.s32.totalorder %s109, %s112
      %p118 = scmp.eq.s32.totalorder %s15, 0
      %p119 = por %p117, %p118
      %p120 = scmp.ne.s32.totalorder %s109, %s112
      %p121 = scmp.eq.s32.totalorder %s20, 3
      %p122 = por %p120, %p121
      %p123 = scmp.ne.s32.totalorder %s112, %s113
      %p124 = scmp.eq.s32.totalorder %s20, 0
      %p125 = por %p123, %p124
      %p126 = scmp.ne.s32.totalorder %s112, %s113
      %p127 = scmp.eq.s32.totalorder %s21, 3
      %p128 = por %p126, %p127
      %p130 = scmp.ne.s32.totalorder %s113, %s129
      %p131 = scmp.eq.s32.totalorder %s21, 0
      %p132 = por %p130, %p131
      %p133 = scmp.le.s32.totalorder 1, %s15
      %p134 = scmp.lt.s32.totalorder %s15, 5
      %p135 = pnand %p133, %p134
      %p136 = pneg %p135
      // Predicated region
      $region9: #{tpu_custom_call.1} parent=5 // pred_check
        _
      $region10: #{tpu_custom_call.1} parent=5 // pred_check_branch
        %138 = sbr.rel (%p135) target = $region12
      $region11: #{tpu_custom_call.1} parent=5 // pred_region
        %s139 = ssub.s32 %s15, 1
        // Predicated region
        $region13: #{tpu_custom_call.1} parent=11 // pred_check
          %p140 = pneg %p76
        $region14: #{tpu_custom_call.1} parent=11 // pred_check_branch
          %142 = sbr.rel (%p140) target = $region16
        $region15: #{tpu_custom_call.1} parent=11 // pred_region
          _
        $region16: #{tpu_custom_call.1} parent=11 // pred_fallthru
          _
        // Predicated region
        $region17: #{tpu_custom_call.1} parent=11 // pred_check
          %p143 = pneg %p97
        $region18: #{tpu_custom_call.1} parent=11 // pred_check_branch
          %145 = sbr.rel (%p143) target = $region20
        $region19: #{tpu_custom_call.1} parent=11 // pred_region
          _
        $region20: #{tpu_custom_call.1} parent=11 // pred_fallthru
          _
      $region12: #{tpu_custom_call.1} parent=5 // pred_fallthru
        _
      %p146 = scmp.lt.s32.totalorder %s15, 4
      // Predicated region
      $region21: #{tpu_custom_call.1} parent=5 // pred_check
        %p147 = pneg %p146
      $region22: #{tpu_custom_call.1} parent=5 // pred_check_branch
        %149 = sbr.rel (%p147) target = $region24
      $region23: #{tpu_custom_call.1} parent=5 // pred_region
        // Predicated region
        $region25: #{tpu_custom_call.1} parent=23 // pred_check
          %p150 = pneg %p49
        $region26: #{tpu_custom_call.1} parent=23 // pred_check_branch
          %152 = sbr.rel (%p150) target = $region28
        $region27: #{tpu_custom_call.1} parent=23 // pred_region
          %s153 = sand.u32 %s39, 1
          %s154 = scalar_lea.sflag [#allocation3], %s153
          %s155 = sand.u32 %s39, 1
          %s156 = smul.addr %s155, 288
          %s157 = scalar_lea.vmem [#allocation2], %s156
          %s158 = smul.u32 4, %s23
          %s160 = ssub.s32 4608, 4608
          %161 = vsyncadd %s154, %s160
          %s162 = smul.addr %s22, 144
          %s163 = sadd.s32 %s158, %s162
          %s164 = smul.addr %s163, 64
          %s165 = scalar_lea.hbm %s0, %s164
          %s166 = sshll.u32 %s157, 4
          %s167 = int_to_ptr.vmem [resolvable:$true] %s166
          %172 = dma.hbm_to_vmem [thread:$0]  %s165, 4608, %s167, %s154, 512, 256, 16
        $region28: #{tpu_custom_call.1} parent=23 // pred_fallthru
          _
      $region24: #{tpu_custom_call.1} parent=5 // pred_fallthru
        _
      %p173 = scmp.le.s32.totalorder 1, %s15
      %p174 = scmp.lt.s32.totalorder %s15, 5
      %p175 = pnand %p173, %p174
      %p176 = pneg %p175
      // Predicated region
      $region29: #{tpu_custom_call.1} parent=5 // pred_check
        _
      $region30: #{tpu_custom_call.1} parent=5 // pred_check_branch
        %178 = sbr.rel (%p175) target = $region32
      $region31: #{tpu_custom_call.1} parent=5 // pred_region
        %s179 = ssub.s32 %s15, 1
        %s180 = sand.u32 %s42, 1
        %s181 = scalar_lea.sflag [#allocation3], %s180
        %s182 = sand.u32 %s42, 1
        %s183 = smul.addr %s182, 288
        %s184 = scalar_lea.vmem [#allocation2], %s183
        // Predicated region
        $region33: #{tpu_custom_call.1} parent=31 // pred_check
          %p185 = pneg %p55
        $region34: #{tpu_custom_call.1} parent=31 // pred_check_branch
          %187 = sbr.rel (%p185) target = $region36
        $region35: #{tpu_custom_call.1} parent=31 // pred_region
          %188 = dma.done %s181, 4608
        $region36: #{tpu_custom_call.1} parent=31 // pred_fallthru
          _
        %s189 = sand.u32 %s42, 1
        %s190 = scalar_lea.sflag [#allocation3], %s189
        %s191 = sand.u32 %s42, 1
        %s192 = smul.addr %s191, 288
        %s193 = scalar_lea.vmem [#allocation2], %s192
        %p194 = pneg %p55
        %p195 = pneg %p52
        %p196 = pneg %p76
        %p197 = pneg %p73
        %p198 = pneg %p97
        %p199 = pneg %p94
        %p200 = pneg %p125
        %p201 = pneg %p122
        %s202 = sand.u32 %s112, 1
        %s203 = scalar_lea.sflag [#allocation4], %s202
        %s204 = sand.u32 %s112, 1
        %s205 = smul.addr %s204, 64
        %s206 = scalar_lea.vmem [#allocation5], %s205
        %s207 = smul.u32 4, %s25
        %s208 = smul.u32 4, %s25
        %v210 = vld [vmem:[%s1] sm:$0xff]
        %v211 = vld [vmem:[%s1 + $0x8] sm:$0xff]
        %v212 = vld [vmem:[%s184] sm:$0xff]
        %v213 = vld [vmem:[%s184 + $0x8] sm:$0xff]
        %v214 = vld [vmem:[%s184 + $0x10] sm:$0xff]
        %v215 = vld [vmem:[%s184 + $0x18] sm:$0xff]
        %v216 = vld [vmem:[%s184 + $0x20] sm:$0xff]
        %v217 = vld [vmem:[%s184 + $0x28] sm:$0xff]
        %v218 = vld [vmem:[%s184 + $0x30] sm:$0xff]
        %v219 = vld [vmem:[%s184 + $0x38] sm:$0xff]
        %v220 = vld [vmem:[%s184 + $0x40] sm:$0xff]
        %v221 = vld [vmem:[%s184 + $0x48] sm:$0xff]
        %v222 = vld [vmem:[%s184 + $0x50] sm:$0xff]
        %v223 = vld [vmem:[%s184 + $0x58] sm:$0xff]
        %v224 = vld [vmem:[%s184 + $0x60] sm:$0xff]
        %v225 = vld [vmem:[%s184 + $0x68] sm:$0xff]
        %v226 = vld [vmem:[%s184 + $0x70] sm:$0xff]
        %v227 = vld [vmem:[%s184 + $0x78] sm:$0xff]
        %v228 = vld [vmem:[%s184 + $0x80] sm:$0xff]
        %v229 = vld [vmem:[%s184 + $0x88] sm:$0xff]
        %v230 = vld [vmem:[%s184 + $0x90] sm:$0xff]
        %v231 = vld [vmem:[%s184 + $0x98] sm:$0xff]
        %v232 = vld [vmem:[%s184 + $0xa0] sm:$0xff]
        %v233 = vld [vmem:[%s184 + $0xa8] sm:$0xff]
        %v234 = vld [vmem:[%s184 + $0xb0] sm:$0xff]
        %v235 = vld [vmem:[%s184 + $0xb8] sm:$0xff]
        %v236 = vld [vmem:[%s184 + $0xc0] sm:$0xff]
        %v237 = vld [vmem:[%s184 + $0xc8] sm:$0xff]
        %v238 = vld [vmem:[%s184 + $0xd0] sm:$0xff]
        %v239 = vld [vmem:[%s184 + $0xd8] sm:$0xff]
        %v240 = vld [vmem:[%s184 + $0xe0] sm:$0xff]
        %v241 = vld [vmem:[%s184 + $0xe8] sm:$0xff]
        %v242 = vld [vmem:[%s184 + $0xf0] sm:$0xff]
        %v243 = vld [vmem:[%s184 + $0xf8] sm:$0xff]
        %v244 = vld [vmem:[%s184 + $0x100] sm:$0xff]
        %v245 = vld [vmem:[%s184 + $0x108] sm:$0xff]
        %v246 = vld [vmem:[%s184 + $0x110] sm:$0xff]
        %v247 = vld [vmem:[%s184 + $0x118] sm:$0xff]
        %v248 = vld [vmem:[%s2] sm:$0xff]
        %v249 = vld [vmem:[%s2 + $0x8] sm:$0xff]
        %251 = vset.pattern.permute.xlu0 0
        %252 = vperm.xlu0 %251, %v248
        %v253 = vpop.permute.xlu0 %252
        %256 = vset.pattern.permute.xlu0 0
        %257 = vperm.xlu0 %256, %v249
        %v258 = vpop.permute.xlu0 %257
        %v262 = vunpack.c.l.b16 %v210
        %v263 = vunpack.c.h.b16 %v210
        %v264 = vunpack.c.l.b16 %v211
        %v265 = vunpack.c.h.b16 %v211
        %v266 = vpack.c.b16 %v264, %v262
        %v267 = vpack.c.b16 %v265, %v263
        %v305 = vunpack.c.l.b16 %v212
        %v306 = vunpack.c.h.b16 %v212
        %v307 = vunpack.c.l.b16 %v213
        %v308 = vunpack.c.h.b16 %v213
        %v309 = vunpack.c.l.b16 %v214
        %v310 = vunpack.c.h.b16 %v214
        %v311 = vunpack.c.l.b16 %v215
        %v312 = vunpack.c.h.b16 %v215
        %v313 = vunpack.c.l.b16 %v216
        %v314 = vunpack.c.h.b16 %v216
        %v315 = vunpack.c.l.b16 %v217
        %v316 = vunpack.c.h.b16 %v217
        %v317 = vunpack.c.l.b16 %v218
        %v318 = vunpack.c.h.b16 %v218
        %v319 = vunpack.c.l.b16 %v219
        %v320 = vunpack.c.h.b16 %v219
        %v321 = vunpack.c.l.b16 %v220
        %v322 = vunpack.c.h.b16 %v220
        %v323 = vunpack.c.l.b16 %v221
        %v324 = vunpack.c.h.b16 %v221
        %v325 = vunpack.c.l.b16 %v222
        %v326 = vunpack.c.h.b16 %v222
        %v327 = vunpack.c.l.b16 %v223
        %v328 = vunpack.c.h.b16 %v223
        %v329 = vunpack.c.l.b16 %v224
        %v330 = vunpack.c.h.b16 %v224
        %v331 = vunpack.c.l.b16 %v225
        %v332 = vunpack.c.h.b16 %v225
        %v333 = vunpack.c.l.b16 %v226
        %v334 = vunpack.c.h.b16 %v226
        %v335 = vunpack.c.l.b16 %v227
        %v336 = vunpack.c.h.b16 %v227
        %v337 = vunpack.c.l.b16 %v228
        %v338 = vunpack.c.h.b16 %v228
        %v339 = vunpack.c.l.b16 %v229
        %v340 = vunpack.c.h.b16 %v229
        %v341 = vunpack.c.l.b16 %v230
        %v342 = vunpack.c.h.b16 %v230
        %v343 = vunpack.c.l.b16 %v231
        %v344 = vunpack.c.h.b16 %v231
        %v345 = vunpack.c.l.b16 %v232
        %v346 = vunpack.c.h.b16 %v232
        %v347 = vunpack.c.l.b16 %v233
        %v348 = vunpack.c.h.b16 %v233
        %v349 = vunpack.c.l.b16 %v234
        %v350 = vunpack.c.h.b16 %v234
        %v351 = vunpack.c.l.b16 %v235
        %v352 = vunpack.c.h.b16 %v235
        %v353 = vunpack.c.l.b16 %v236
        %v354 = vunpack.c.h.b16 %v236
        %v355 = vunpack.c.l.b16 %v237
        %v356 = vunpack.c.h.b16 %v237
        %v357 = vunpack.c.l.b16 %v238
        %v358 = vunpack.c.h.b16 %v238
        %v359 = vunpack.c.l.b16 %v239
        %v360 = vunpack.c.h.b16 %v239
        %v361 = vunpack.c.l.b16 %v240
        %v362 = vunpack.c.h.b16 %v240
        %v363 = vunpack.c.l.b16 %v241
        %v364 = vunpack.c.h.b16 %v241
        %v365 = vunpack.c.l.b16 %v242
        %v366 = vunpack.c.h.b16 %v242
        %v367 = vunpack.c.l.b16 %v243
        %v368 = vunpack.c.h.b16 %v243
        %v369 = vunpack.c.l.b16 %v244
        %v370 = vunpack.c.h.b16 %v244
        %v371 = vunpack.c.l.b16 %v245
        %v372 = vunpack.c.h.b16 %v245
        %v373 = vunpack.c.l.b16 %v246
        %v374 = vunpack.c.h.b16 %v246
        %v375 = vunpack.c.l.b16 %v247
        %v376 = vunpack.c.h.b16 %v247
        %v377 = vpack.c.b16 %v309, %v305
        %v378 = vpack.c.b16 %v310, %v306
        %v379 = vpack.c.b16 %v311, %v307
        %v380 = vpack.c.b16 %v312, %v308
        %v381 = vpack.c.b16 %v317, %v313
        %v382 = vpack.c.b16 %v318, %v314
        %v383 = vpack.c.b16 %v319, %v315
        %v384 = vpack.c.b16 %v320, %v316
        %v385 = vpack.c.b16 %v325, %v321
        %v386 = vpack.c.b16 %v326, %v322
        %v387 = vpack.c.b16 %v327, %v323
        %v388 = vpack.c.b16 %v328, %v324
        %v389 = vpack.c.b16 %v333, %v329
        %v390 = vpack.c.b16 %v334, %v330
        %v391 = vpack.c.b16 %v335, %v331
        %v392 = vpack.c.b16 %v336, %v332
        %v393 = vpack.c.b16 %v341, %v337
        %v394 = vpack.c.b16 %v342, %v338
        %v395 = vpack.c.b16 %v343, %v339
        %v396 = vpack.c.b16 %v344, %v340
        %v397 = vpack.c.b16 %v349, %v345
        %v398 = vpack.c.b16 %v350, %v346
        %v399 = vpack.c.b16 %v351, %v347
        %v400 = vpack.c.b16 %v352, %v348
        %v401 = vpack.c.b16 %v357, %v353
        %v402 = vpack.c.b16 %v358, %v354
        %v403 = vpack.c.b16 %v359, %v355
        %v404 = vpack.c.b16 %v360, %v356
        %v405 = vpack.c.b16 %v365, %v361
        %v406 = vpack.c.b16 %v366, %v362
        %v407 = vpack.c.b16 %v367, %v363
        %v408 = vpack.c.b16 %v368, %v364
        %v409 = vpack.c.b16 %v373, %v369
        %v410 = vpack.c.b16 %v374, %v370
        %v411 = vpack.c.b16 %v375, %v371
        %v412 = vpack.c.b16 %v376, %v372
        %vm449 = vcmask 130048
        %v451 = vsel %vm449, %v267, 0
        %453 = vmatprep.subr.bf16.mxu0 %v378
        %454 = vmatpush1.bf16.msra.mxu0 %v377
        %455 = vmatprep.subr.bf16.mxu0 %v382
        %456 = vmatpush1.bf16.msra.mxu0 %v381
        %457 = vmatprep.subr.bf16.mxu0 %v386
        %458 = vmatpush1.bf16.msra.mxu0 %v385
        %459 = vmatprep.subr.bf16.mxu0 %v390
        %460 = vmatpush1.bf16.msra.mxu0 %v389
        %461 = vmatprep.subr.bf16.mxu0 %v394
        %462 = vmatpush1.bf16.msra.mxu0 %v393
        %463 = vmatprep.subr.bf16.mxu0 %v398
        %464 = vmatpush1.bf16.msra.mxu0 %v397
        %465 = vmatprep.subr.bf16.mxu0 %v402
        %466 = vmatpush1.bf16.msra.mxu0 %v401
        %467 = vmatprep.subr.bf16.mxu0 %v406
        %468 = vmatpush1.bf16.msra.mxu0 %v405
        %469 = vmatprep.subr.bf16.mxu0 %v410
        %470 = vmatpush1.bf16.msra.mxu0 %v409
        %471 = vmatprep.subr.bf16.mxu0 0
        %472 = vmatpush1.bf16.msra.mxu0 0
        %473 = vmatprep.subr.bf16.mxu0 0
        %474 = vmatpush1.bf16.msra.mxu0 0
        %475 = vmatprep.subr.bf16.mxu0 0
        %476 = vmatpush1.bf16.msra.mxu0 0
        %477 = vmatprep.subr.bf16.mxu0 0
        %478 = vmatpush1.bf16.msra.mxu0 0
        %479 = vmatprep.subr.bf16.mxu0 0
        %480 = vmatpush1.bf16.msra.mxu0 0
        %481 = vmatprep.subr.bf16.mxu0 0
        %482 = vmatpush1.bf16.msra.mxu0 0
        %483 = vmatprep.subr.bf16.mxu0 0
        %484 = vmatpush1.bf16.msra.mxu0 0
        %485 = vmatprep.mubr.bf16.mxu0 %v451
        %486 = vmatmul.mubr.bf16.gmra.mrb[0].mxu0 %v266
        %v487 = vpop.f32.mrb[0].mxu0
        %v488 = vadd.f32 %v253, %v487
        %v489 = vpop.f32.mrb[0].mxu0
        %v490 = vadd.f32 %v253, %v489
        %v491 = vpop.f32.mrb[0].mxu0
        %v492 = vadd.f32 %v258, %v491
        %v493 = vpop.f32.mrb[0].mxu0
        %v494 = vadd.f32 %v258, %v493
        %495 = vdwg.mxu0
        %496 = vmatprep.subr.bf16.mxu0 %v380
        %497 = vmatpush1.bf16.msra.mxu0 %v379
        %498 = vmatprep.subr.bf16.mxu0 %v384
        %499 = vmatpush1.bf16.msra.mxu0 %v383
        %500 = vmatprep.subr.bf16.mxu0 %v388
        %501 = vmatpush1.bf16.msra.mxu0 %v387
        %502 = vmatprep.subr.bf16.mxu0 %v392
        %503 = vmatpush1.bf16.msra.mxu0 %v391
        %504 = vmatprep.subr.bf16.mxu0 %v396
        %505 = vmatpush1.bf16.msra.mxu0 %v395
        %506 = vmatprep.subr.bf16.mxu0 %v400
        %507 = vmatpush1.bf16.msra.mxu0 %v399
        %508 = vmatprep.subr.bf16.mxu0 %v404
        %509 = vmatpush1.bf16.msra.mxu0 %v403
        %510 = vmatprep.subr.bf16.mxu0 %v408
        %511 = vmatpush1.bf16.msra.mxu0 %v407
        %512 = vmatprep.subr.bf16.mxu0 %v412
        %513 = vmatpush1.bf16.msra.mxu0 %v411
        %514 = vmatprep.subr.bf16.mxu0 0
        %515 = vmatpush1.bf16.msra.mxu0 0
        %516 = vmatprep.subr.bf16.mxu0 0
        %517 = vmatpush1.bf16.msra.mxu0 0
        %518 = vmatprep.subr.bf16.mxu0 0
        %519 = vmatpush1.bf16.msra.mxu0 0
        %520 = vmatprep.subr.bf16.mxu0 0
        %521 = vmatpush1.bf16.msra.mxu0 0
        %522 = vmatprep.subr.bf16.mxu0 0
        %523 = vmatpush1.bf16.msra.mxu0 0
        %524 = vmatprep.subr.bf16.mxu0 0
        %525 = vmatpush1.bf16.msra.mxu0 0
        %526 = vmatprep.subr.bf16.mxu0 0
        %527 = vmatpush1.bf16.msra.mxu0 0
        %528 = vmatprep.mubr.bf16.mxu0 %v451
        %529 = vmatmul.mubr.bf16.gmra.mrb[0].mxu0 %v266
        %v530 = vpop.f32.mrb[0].mxu0
        %v531 = vadd.f32 %v253, %v530
        %v532 = vpop.f32.mrb[0].mxu0
        %v533 = vadd.f32 %v253, %v532
        %v534 = vpop.f32.mrb[0].mxu0
        %v535 = vadd.f32 %v258, %v534
        %v536 = vpop.f32.mrb[0].mxu0
        %v537 = vadd.f32 %v258, %v536
        %538 = vdwg.mxu0
        %539 = vst [vmem:[%s206] sm:$0xff] %v488
        %540 = vst [vmem:[%s206 + $0x8] sm:$0xff] %v490
        %541 = vst [vmem:[%s206 + $0x10] sm:$0xff] %v531
        %542 = vst [vmem:[%s206 + $0x18] sm:$0xff] %v533
        %543 = vst [vmem:[%s206 + $0x20] sm:$0xff] %v492
        %544 = vst [vmem:[%s206 + $0x28] sm:$0xff] %v494
        %545 = vst [vmem:[%s206 + $0x30] sm:$0xff] %v535
        %546 = vst [vmem:[%s206 + $0x38] sm:$0xff] %v537
        %s547 = sand.u32 %s112, 1
        %s548 = scalar_lea.sflag [#allocation4], %s547
        %s549 = sand.u32 %s112, 1
        %s550 = smul.addr %s549, 64
        %s551 = scalar_lea.vmem [#allocation5], %s550
        // Predicated region
        $region37: #{tpu_custom_call.1} parent=31 // pred_check
          %p552 = pneg %p122
        $region38: #{tpu_custom_call.1} parent=31 // pred_check_branch
          %554 = sbr.rel (%p552) target = $region40
        $region39: #{tpu_custom_call.1} parent=31 // pred_region
          %s555 = smul.u32 4, %s25
          %s557 = ssub.s32 1024, 1024
          %558 = vsyncadd %s548, %s557
          %s559 = smul.addr %s24, 16
          %s560 = sadd.s32 %s555, %s559
          %s561 = smul.addr %s560, 128
          %s562 = scalar_lea.hbm %s3, %s561
          %s563 = sshll.u32 %s551, 4
          %s564 = int_to_ptr.vmem [resolvable:$true] %s563
          %569 = dma.vmem_to_hbm [thread:$0]  %s564, 1024, %s562, %s548, 512, 1024, 32
        $region40: #{tpu_custom_call.1} parent=31 // pred_fallthru
          _
      $region32: #{tpu_custom_call.1} parent=5 // pred_fallthru
        _
      %p570 = scmp.le.s32.totalorder 2, %s15
      // Predicated region
      $region41: #{tpu_custom_call.1} parent=5 // pred_check
        %p571 = pneg %p570
      $region42: #{tpu_custom_call.1} parent=5 // pred_check_branch
        %573 = sbr.rel (%p571) target = $region44
      $region43: #{tpu_custom_call.1} parent=5 // pred_region
        %s574 = ssub.s32 %s15, 2
        // Predicated region
        $region45: #{tpu_custom_call.1} parent=43 // pred_check
          %p575 = pneg %p128
        $region46: #{tpu_custom_call.1} parent=43 // pred_check_branch
          %577 = sbr.rel (%p575) target = $region48
        $region47: #{tpu_custom_call.1} parent=43 // pred_region
          %s578 = sand.u32 %s113, 1
          %s579 = scalar_lea.sflag [#allocation4], %s578
          %s580 = sand.u32 %s113, 1
          %s581 = smul.addr %s580, 64
          %s582 = scalar_lea.vmem [#allocation5], %s581
          %583 = dma.done %s579, 1024
        $region48: #{tpu_custom_call.1} parent=43 // pred_fallthru
          _
      $region44: #{tpu_custom_call.1} parent=5 // pred_fallthru
        _
    $region6: #{tpu_custom_call.1} parent=1 // loop_footer
      %s19 = sadd.s32 1, %s15
    $region7: #{tpu_custom_call.1} parent=1 // loop_footer_branch
      %14 = sbr.rel target = $region3
    $region8: #{tpu_custom_call.1} parent=1 // loop_exit
      _
    %584 = vsyncpa [#allocation3], 1
    %s585 = scalar_lea.sflag [#allocation3], 1
    %586 = vsyncpa %s585, 1
    %587 = vsyncpa [#allocation4], 1
    %s588 = scalar_lea.sflag [#allocation4], 1
    %589 = vsyncpa %s588, 1

</llo_original>
